<compile_context>
chip_gen: v6e
topology: v6e:2x2x1
jax: 0.10.0
libtpu: 0.0.40
codegen_flags: <defaults>
</compile_context>

<pallas_src>
from functools import partial

import jax
import jax.numpy as jnp
from jax.experimental import pallas as pl
from jax.experimental.pallas import tpu as pltpu

BN_EPS = 1e-5
LANE = 128


def _round_up(n, m):
    return ((n + m - 1) // m) * m


# ----------------------------------------------------------------------------
# Pallas kernel
# ----------------------------------------------------------------------------
def _structured_net_kernel(n_layers, cat_offsets, x_cat_ref, x_cont_ref, slab_ref,
                           w_cat0_ref, w_cont0_ref, *refs):
    """Ref order:
       x_cat_ref  : (B, n_cat)  int32   raw categorical codes
       x_cont_ref : (B, n_cont) f32     raw continuous features
       slab_ref   : (R, P)      f32     packed small params:
                      rows 0 / 1          : cont BN gamma / beta        (width n_cont)
                      rows 2+3i .. 2+3i+2 : layer-i bias / gamma / beta (width Fp_i)
                      row 2+3L            : output weight row           (width Fp_last)
                      row 2+3L+1          : output bias                 (col 0)
       w_cat0_ref : (CP, F0p)   layer-0 weight with the embedding tables folded in
                                (row off_i + code  ==  emb_i[code] @ W0_emb_rows)
       w_cont0_ref: (n_cont, F0p) layer-0 weight rows for the continuous features
       refs[0 : n_layers-1] : padded, pre-transposed weights for layers 1..L-1
       refs[n_layers-1]     : out_ref (B, 1)
    """
    w_refs = refs[:n_layers - 1]
    out_ref = refs[n_layers - 1]

    B = x_cont_ref.shape[0]
    inv_b = 1.0 / B
    slab = slab_ref[...]

    def bn_affine(a, gamma, beta):
        # Single-pass batch statistics (f32), folded into a per-feature affine:
        #   y = a * scale + shift
        s1 = jnp.sum(a, axis=0, keepdims=True)
        s2 = jnp.sum(a * a, axis=0, keepdims=True)
        mu = s1 * inv_b
        # Clamp: E[x^2] - E[x]^2 can cancel slightly negative for ReLU outputs
        # whose mean >> std, which would NaN through rsqrt(var + eps).
        var = jnp.maximum(s2 * inv_b - mu * mu, 0.0)
        scale = gamma * jax.lax.rsqrt(var + BN_EPS)
        shift = beta - mu * scale
        return scale, shift

    # ---- input BN on the raw continuous features (train-mode batch stats),
    #      computed directly on the narrow (B, n_cont) operand.
    cont = x_cont_ref[...]
    n_cont = cont.shape[1]
    cs, ct = bn_affine(cont, slab[0:1, 0:n_cont], slab[1:2, 0:n_cont])
    cont_bn = cont * cs + ct

    # ---- fused embedding gather + concat + layer-0 matmul:
    #      one-hot(x_cat) @ (block-diag emb tables folded into W0) on the MXU.
    w_cat0 = w_cat0_ref[...]
    w_cont0 = w_cont0_ref[...]
    cp = w_cat0.shape[0]
    lane = jax.lax.broadcasted_iota(jnp.int32, (B, cp), 1)
    xc = x_cat_ref[...]
    onehot = jnp.zeros((B, cp), jnp.float32)
    for i, off in enumerate(cat_offsets):
        idx = xc[:, i:i + 1] + off                       # (B, 1) int32
        onehot = onehot + jnp.where(lane == idx, 1.0, 0.0)

    def apply_layer(i, h_pre_bias):
        fp = h_pre_bias.shape[1]
        r = 2 + 3 * i
        bias = slab[r:r + 1, 0:fp]
        gamma = slab[r + 1:r + 2, 0:fp]
        beta = slab[r + 2:r + 3, 0:fp]
        a = jnp.maximum(h_pre_bias + bias, 0.0)
        s, t = bn_affine(a, gamma, beta)
        return a * s + t                                 # padded cols stay exactly 0

    h0 = (jnp.dot(onehot.astype(w_cat0.dtype), w_cat0,
                  preferred_element_type=jnp.float32)
          + jnp.dot(cont_bn.astype(w_cont0.dtype), w_cont0,
                    preferred_element_type=jnp.float32))
    x = apply_layer(0, h0)

    # ---- remaining hidden layers: x = BN(relu(x @ W + b)) with BN as an affine.
    for i in range(1, n_layers):
        w = w_refs[i - 1][...]                           # (Fp_{i-1}, Fp_i)
        h = jnp.dot(x.astype(w.dtype), w, preferred_element_type=jnp.float32)
        x = apply_layer(i, h)

    # ---- output head: 1-wide Linear as VPU multiply + lane reduce; only the real
    #      output column is stored (out_shape is (B, 1) -> no zero-lane writeback).
    r = 2 + 3 * n_layers
    fpl = x.shape[1]
    w_out = slab[r:r + 1, 0:fpl]
    b_out = slab[r + 1:r + 2, 0:1]
    out_ref[...] = jnp.sum(x * w_out, axis=1, keepdims=True) + b_out


# ----------------------------------------------------------------------------
# One-time parameter packing (hoisted out of the per-call path)
# ----------------------------------------------------------------------------
def pack_params(params, matmul_dtype=jnp.float32):
    emb_tables = params["emb_tables"]
    emb_dims = [int(t.shape[1]) for t in emb_tables]
    cards = [int(t.shape[0]) for t in emb_tables]
    n_emb = sum(emb_dims)
    n_cont = int(params["cont_gamma"].shape[1])
    n_layers = len(params["lin_w"])

    f = [int(params["lin_w"][i].shape[0]) for i in range(n_layers)]
    fp = [_round_up(d, LANE) for d in f]

    # Combined one-hot width over all categorical columns (lane-dense).
    c_total = sum(cards)
    cp = _round_up(max(c_total, 1), LANE)
    cat_offsets, off = [], 0
    for c in cards:
        cat_offsets.append(off)
        off += c

    # Packed small-param slab (one DMA for all per-layer vectors).
    P = max(fp + [LANE])
    R = 2 + 3 * n_layers + 2
    slab = jnp.zeros((R, P), jnp.float32)
    slab = slab.at[0, :n_cont].set(params["cont_gamma"][0])
    slab = slab.at[1, :n_cont].set(params["cont_beta"][0])
    for i in range(n_layers):
        r = 2 + 3 * i
        slab = slab.at[r, :f[i]].set(params["lin_b"][i][0])
        slab = slab.at[r + 1, :f[i]].set(params["bn_gamma"][i][0])   # padded cols stay 0
        slab = slab.at[r + 2, :f[i]].set(params["bn_beta"][i][0])
    r = 2 + 3 * n_layers
    slab = slab.at[r, :f[-1]].set(params["out_w"][0])
    slab = slab.at[r + 1, 0].set(params["out_b"][0, 0])

    # Layer-0 weight, transposed once and split by input group.  The embedding
    # tables are folded in so the in-kernel one-hot matmul performs gather,
    # concat and the layer-0 contraction in a single MXU pass.
    # Columns of lin_w[0] are ordered [emb_0 | emb_1 | ... | cont].
    w0t = jnp.transpose(params["lin_w"][0]).astype(jnp.float32)      # (n_emb+n_cont, F0)
    w_cat0 = jnp.zeros((cp, fp[0]), jnp.float32)
    col = 0
    for tbl, c, s, o in zip(emb_tables, cards, emb_dims, cat_offsets):
        folded = tbl.astype(jnp.float32) @ w0t[col:col + s, :]       # (c, F0)
        w_cat0 = w_cat0.at[o:o + c, :f[0]].set(folded)
        col += s
    w_cont0 = jnp.zeros((n_cont, fp[0]), jnp.float32)
    w_cont0 = w_cont0.at[:, :f[0]].set(w0t[n_emb:n_emb + n_cont, :])

    # Remaining hidden weights: transpose + zero-pad once, lane-dense.
    weights = []
    for i in range(1, n_layers):
        wt = jnp.transpose(params["lin_w"][i])                       # (f[i-1], f[i])
        wt = jnp.pad(wt, ((0, fp[i - 1] - f[i - 1]), (0, fp[i] - f[i])))
        weights.append(wt.astype(matmul_dtype))

    return {
        "slab": slab,
        "w_cat0": w_cat0.astype(matmul_dtype),
        "w_cont0": w_cont0.astype(matmul_dtype),
        "weights": weights,
        "n_layers": n_layers,
        "cat_offsets": tuple(cat_offsets),
    }


# ----------------------------------------------------------------------------
# Generation-aware VMEM budget (v5e/v6e: 128 MiB physical, v7x: 64 MiB)
# ----------------------------------------------------------------------------
def _vmem_ceiling_bytes():
    phys = 64 * 2**20                                   # conservative default (v7x)
    try:
        phys = int(pltpu.get_tpu_info().vmem_capacity_bytes)
    except Exception:
        pass
    # ~3/4 of physical, and always leave >= 16 MiB headroom for the compiler.
    return max(16 * 2**20, min(phys - 16 * 2**20, (3 * phys) // 4))


# ----------------------------------------------------------------------------
# Per-call wrapper (no host-side gather/concat/pad; everything is in-kernel)
# ----------------------------------------------------------------------------
def structured_net_forward(packed, x_cat, x_cont):
    # TODO(synk): nn.Dropout (emb_drop and per-layer drops) is stochastic in train
    # mode and is implemented as identity (eval semantics).
    B = x_cat.shape[0]
    n_layers = packed["n_layers"]
    ops = [x_cat.astype(jnp.int32), x_cont.astype(jnp.float32),
           packed["slab"], packed["w_cat0"], packed["w_cont0"], *packed["weights"]]

    # Rough VMEM footprint: operands + one-hot + a few live (B, Fp) f32 temporaries.
    dims = [int(packed["w_cat0"].shape[0]), int(packed["w_cat0"].shape[1]),
            int(packed["w_cont0"].shape[1])] + [int(w.shape[1]) for w in packed["weights"]]
    max_f = max(dims)
    footprint = sum(int(a.nbytes) for a in ops) + B * (8 * max_f + 1) * 4
    vmem_limit = int(min(max(2 * footprint, 32 * 2**20), _vmem_ceiling_bytes()))

    vmem = pl.BlockSpec(memory_space=pltpu.MemorySpace.VMEM)
    out = pl.pallas_call(
        partial(_structured_net_kernel, n_layers, packed["cat_offsets"]),
        out_shape=jax.ShapeDtypeStruct((B, 1), jnp.float32),
        in_specs=[vmem] * len(ops),
        out_specs=vmem,
        compiler_params=pltpu.CompilerParams(vmem_limit_bytes=vmem_limit),
    )(*ops)
    # TODO(synk): for very large B (beyond the VMEM ceiling), add a batch grid.
    # Because each BN's batch statistics depend on the previous layer's full-batch
    # BN output, that requires L+1 stats/apply passes with HBM activation scratch
    # (not a single two-pass); mark the batch axis "parallel" for v7x's 2 TCs and
    # mask padded rows out of the partial last tile's sum/sumsq.
    return out


# ----------------------------------------------------------------------------
# Deterministic parameter init (mirrors StructuredNet.__init__ shapes / scales)
# ----------------------------------------------------------------------------
def init_params(key, emb_szs, n_cont, szs):
    n_emb = sum(s for _, s in emb_szs)
    dims = [n_emb + n_cont] + list(szs)
    params = {}

    k_emb, k_lin, k_out = jax.random.split(key, 3)

    emb_keys = jax.random.split(k_emb, len(emb_szs))
    params["emb_tables"] = []
    for (c, s), ek in zip(emb_szs, emb_keys):
        sc = 2.0 / (s + 1)                        # emb_init: uniform(-sc, sc)
        params["emb_tables"].append(
            jax.random.uniform(ek, (c, s), jnp.float32, -sc, sc))

    lin_keys = jax.random.split(k_lin, 2 * len(szs))
    params["lin_w"], params["lin_b"] = [], []
    params["bn_gamma"], params["bn_beta"] = [], []
    for i in range(len(szs)):
        fan_in, fan_out = dims[i], dims[i + 1]
        std = (2.0 / fan_in) ** 0.5               # kaiming_normal_
        w = std * jax.random.normal(lin_keys[2 * i], (fan_out, fan_in), jnp.float32)
        bound = 1.0 / (fan_in ** 0.5)             # torch Linear default bias init
        b = jax.random.uniform(lin_keys[2 * i + 1], (1, fan_out), jnp.float32,
                               -bound, bound)
        params["lin_w"].append(w)
        params["lin_b"].append(b)
        params["bn_gamma"].append(jnp.ones((1, fan_out), jnp.float32))
        params["bn_beta"].append(jnp.zeros((1, fan_out), jnp.float32))

    kw, kb = jax.random.split(k_out)
    std = (2.0 / dims[-1]) ** 0.5
    params["out_w"] = std * jax.random.normal(kw, (1, dims[-1]), jnp.float32)
    bound = 1.0 / (dims[-1] ** 0.5)
    params["out_b"] = jax.random.uniform(kb, (1, 1), jnp.float32, -bound, bound)

    params["cont_gamma"] = jnp.ones((1, n_cont), jnp.float32)
    params["cont_beta"] = jnp.zeros((1, n_cont), jnp.float32)
    return params


# ----------------------------------------------------------------------------
# Pure-JAX reference (same semantics) for correctness check
# ----------------------------------------------------------------------------
def reference_forward(params, x_cat, x_cont):
    def bn_train(x, gamma, beta):
        mu = jnp.mean(x, axis=0, keepdims=True)
        var = jnp.mean((x - mu) ** 2, axis=0, keepdims=True)
        return (x - mu) / jnp.sqrt(var + BN_EPS) * gamma + beta

    embs = [tbl[x_cat[:, i]] for i, tbl in enumerate(params["emb_tables"])]
    x = jnp.concatenate(embs, axis=1)
    x2 = bn_train(x_cont, params["cont_gamma"], params["cont_beta"])
    x = jnp.concatenate([x, x2], axis=1)
    for w, b, g, be in zip(params["lin_w"], params["lin_b"],
                           params["bn_gamma"], params["bn_beta"]):
        x = jnp.maximum(x @ w.T + b, 0.0)
        x = bn_train(x, g, be)
    return x @ params["out_w"].T + params["out_b"]


# ----------------------------------------------------------------------------
if __name__ == "__main__":
    key = jax.random.PRNGKey(0)

    # Small shapes consistent with the module:
    emb_szs = [(10, 4), (8, 3)]   # -> n_emb = 7
    n_cont = 5
    szs = [32, 16]                # hidden layer sizes
    batch = 8

    k_params, k_cat, k_cont = jax.random.split(key, 3)
    params = init_params(k_params, emb_szs, n_cont, szs)

    cat_keys = jax.random.split(k_cat, len(emb_szs))
    x_cat = jnp.stack(
        [jax.random.randint(ck, (batch,), 0, c) for ck, (c, _) in zip(cat_keys, emb_szs)],
        axis=1).astype(jnp.int32)                                     # [8, 2]
    x_cont = jax.random.normal(k_cont, (batch, n_cont), jnp.float32)  # [8, 5]

    ref = reference_forward(params, x_cat, x_cont)

    # f32 matmul path — checked tightly against the pure-JAX reference.
    packed = pack_params(params, matmul_dtype=jnp.float32)
    out = jax.block_until_ready(structured_net_forward(packed, x_cat, x_cont))
    assert out.shape == (batch, 1), out.shape
    assert jnp.allclose(out, ref, rtol=1e-4, atol=1e-4), (out, ref)

    # bf16 matmul path (f32 accumulation, f32 BN stats/activations) — opt-in,
    # sanity-checked for finiteness and rough agreement only.
    packed_bf16 = pack_params(params, matmul_dtype=jnp.bfloat16)
    out_bf16 = jax.block_until_ready(structured_net_forward(packed_bf16, x_cat, x_cont))
    assert out_bf16.shape == (batch, 1), out_bf16.shape
    assert bool(jnp.all(jnp.isfinite(out_bf16)))

    print("KERNEL_OK")
</pallas_src>

<mosaic_0001>
module attributes {stable_mosaic.version = 11 : i64} {
  func.func @_structured_net_kernel(%arg0: memref<8x2xi32, #tpu.memory_space<vmem>>, %arg1: memref<8x5xf32, #tpu.memory_space<vmem>>, %arg2: memref<10x128xf32, #tpu.memory_space<vmem>>, %arg3: memref<128x128xf32, #tpu.memory_space<vmem>>, %arg4: memref<5x128xf32, #tpu.memory_space<vmem>>, %arg5: memref<128x128xf32, #tpu.memory_space<vmem>>, %arg6: memref<8x1xf32, #tpu.memory_space<vmem>>) attributes {dimension_semantics = [], scalar_prefetch = 0 : i64, scratch_operands = 0 : i64, tpu.core_type = #tpu.core_type<tc>} {
    %c0 = arith.constant 0 : index
    %c0_0 = arith.constant 0 : index
    %0 = vector.load %arg2[%c0, %c0_0] : memref<10x128xf32, #tpu.memory_space<vmem>>, vector<10x128xf32>
    %c0_1 = arith.constant 0 : index
    %c0_2 = arith.constant 0 : index
    %1 = vector.load %arg1[%c0_1, %c0_2] : memref<8x5xf32, #tpu.memory_space<vmem>>, vector<8x5xf32>
    %2 = vector.extract_strided_slice %0 {offsets = [0, 0], sizes = [1, 5], strides = [1, 1]} : vector<10x128xf32> to vector<1x5xf32>
    %3 = vector.extract_strided_slice %0 {offsets = [1, 0], sizes = [1, 5], strides = [1, 1]} : vector<10x128xf32> to vector<1x5xf32>
    %cst = arith.constant dense<0.000000e+00> : vector<5xf32>
    %4 = vector.multi_reduction <add>, %1, %cst [0] : vector<8x5xf32> to vector<5xf32>
    %5 = vector.shape_cast %4 : vector<5xf32> to vector<1x5xf32>
    %6 = arith.mulf %1, %1 : vector<8x5xf32>
    %cst_3 = arith.constant dense<0.000000e+00> : vector<5xf32>
    %7 = vector.multi_reduction <add>, %6, %cst_3 [0] : vector<8x5xf32> to vector<5xf32>
    %8 = vector.shape_cast %7 : vector<5xf32> to vector<1x5xf32>
    %cst_4 = arith.constant 1.250000e-01 : f32
    %9 = vector.broadcast %cst_4 : f32 to vector<1x5xf32>
    %10 = arith.mulf %5, %9 : vector<1x5xf32>
    %cst_5 = arith.constant 1.250000e-01 : f32
    %11 = vector.broadcast %cst_5 : f32 to vector<1x5xf32>
    %12 = arith.mulf %8, %11 : vector<1x5xf32>
    %13 = arith.mulf %10, %10 : vector<1x5xf32>
    %14 = arith.subf %12, %13 : vector<1x5xf32>
    %cst_6 = arith.constant 0.000000e+00 : f32
    %15 = vector.broadcast %cst_6 : f32 to vector<1x5xf32>
    %16 = arith.maximumf %14, %15 : vector<1x5xf32>
    %cst_7 = arith.constant 9.99999974E-6 : f32
    %17 = vector.broadcast %cst_7 : f32 to vector<1x5xf32>
    %18 = arith.addf %16, %17 : vector<1x5xf32>
    %19 = math.rsqrt %18 : vector<1x5xf32>
    %20 = arith.mulf %2, %19 : vector<1x5xf32>
    %21 = arith.mulf %10, %20 : vector<1x5xf32>
    %22 = arith.subf %3, %21 : vector<1x5xf32>
    %23 = vector.broadcast %20 : vector<1x5xf32> to vector<8x5xf32>
    %24 = arith.mulf %1, %23 : vector<8x5xf32>
    %25 = vector.broadcast %22 : vector<1x5xf32> to vector<8x5xf32>
    %26 = arith.addf %24, %25 : vector<8x5xf32>
    %c0_8 = arith.constant 0 : index
    %c0_9 = arith.constant 0 : index
    %27 = vector.load %arg3[%c0_8, %c0_9] : memref<128x128xf32, #tpu.memory_space<vmem>>, vector<128x128xf32>
    %c0_10 = arith.constant 0 : index
    %c0_11 = arith.constant 0 : index
    %28 = vector.load %arg4[%c0_10, %c0_11] : memref<5x128xf32, #tpu.memory_space<vmem>>, vector<5x128xf32>
    %29 = tpu.iota {dimensions = array<i32: 1>} : vector<8x128xi32>
    %c0_12 = arith.constant 0 : index
    %c0_13 = arith.constant 0 : index
    %30 = vector.load %arg0[%c0_12, %c0_13] : memref<8x2xi32, #tpu.memory_space<vmem>>, vector<8x2xi32>
    %cst_14 = arith.constant 0.000000e+00 : f32
    %31 = vector.broadcast %cst_14 : f32 to vector<8x128xf32>
    %32 = vector.extract_strided_slice %30 {offsets = [0, 0], sizes = [8, 1], strides = [1, 1]} : vector<8x2xi32> to vector<8x1xi32>
    %c0_i32 = arith.constant 0 : i32
    %33 = vector.broadcast %c0_i32 : i32 to vector<8x1xi32>
    %34 = arith.addi %32, %33 : vector<8x1xi32>
    %35 = vector.broadcast %34 : vector<8x1xi32> to vector<8x128xi32>
    %36 = arith.cmpi eq, %29, %35 : vector<8x128xi32>
    %cst_15 = arith.constant 1.000000e+00 : f32
    %cst_16 = arith.constant 0.000000e+00 : f32
    %37 = vector.broadcast %cst_15 : f32 to vector<8x128xf32>
    %38 = vector.broadcast %cst_16 : f32 to vector<8x128xf32>
    %39 = arith.select %36, %37, %38 : vector<8x128xi1>, vector<8x128xf32>
    %40 = arith.addf %31, %39 : vector<8x128xf32>
    %41 = vector.extract_strided_slice %30 {offsets = [0, 1], sizes = [8, 1], strides = [1, 1]} : vector<8x2xi32> to vector<8x1xi32>
    %c10_i32 = arith.constant 10 : i32
    %42 = vector.broadcast %c10_i32 : i32 to vector<8x1xi32>
    %43 = arith.addi %41, %42 : vector<8x1xi32>
    %44 = vector.broadcast %43 : vector<8x1xi32> to vector<8x128xi32>
    %45 = arith.cmpi eq, %29, %44 : vector<8x128xi32>
    %cst_17 = arith.constant 1.000000e+00 : f32
    %cst_18 = arith.constant 0.000000e+00 : f32
    %46 = vector.broadcast %cst_17 : f32 to vector<8x128xf32>
    %47 = vector.broadcast %cst_18 : f32 to vector<8x128xf32>
    %48 = arith.select %45, %46, %47 : vector<8x128xi1>, vector<8x128xf32>
    %49 = arith.addf %40, %48 : vector<8x128xf32>
    %cst_19 = arith.constant dense<0.000000e+00> : vector<8x128xf32>
    %50 = tpu.matmul %49, %27, %cst_19 {dimension_numbers = #tpu.dot_dimension_numbers<[1], [0], [0], [1], [0, 0, 1, 1], [], []>} : vector<8x128xf32>, vector<128x128xf32>, vector<8x128xf32> -> vector<8x128xf32>
    %cst_20 = arith.constant dense<0.000000e+00> : vector<8x128xf32>
    %51 = tpu.matmul %26, %28, %cst_20 {dimension_numbers = #tpu.dot_dimension_numbers<[1], [0], [0], [1], [0, 0, 1, 1], [], []>} : vector<8x5xf32>, vector<5x128xf32>, vector<8x128xf32> -> vector<8x128xf32>
    %52 = arith.addf %50, %51 : vector<8x128xf32>
    %53 = vector.extract_strided_slice %0 {offsets = [2, 0], sizes = [1, 128], strides = [1, 1]} : vector<10x128xf32> to vector<1x128xf32>
    %54 = vector.extract_strided_slice %0 {offsets = [3, 0], sizes = [1, 128], strides = [1, 1]} : vector<10x128xf32> to vector<1x128xf32>
    %55 = vector.extract_strided_slice %0 {offsets = [4, 0], sizes = [1, 128], strides = [1, 1]} : vector<10x128xf32> to vector<1x128xf32>
    %56 = vector.broadcast %53 : vector<1x128xf32> to vector<8x128xf32>
    %57 = arith.addf %52, %56 : vector<8x128xf32>
    %cst_21 = arith.constant 0.000000e+00 : f32
    %58 = vector.broadcast %cst_21 : f32 to vector<8x128xf32>
    %59 = arith.maximumf %57, %58 : vector<8x128xf32>
    %cst_22 = arith.constant dense<0.000000e+00> : vector<128xf32>
    %60 = vector.multi_reduction <add>, %59, %cst_22 [0] : vector<8x128xf32> to vector<128xf32>
    %61 = vector.shape_cast %60 : vector<128xf32> to vector<1x128xf32>
    %62 = arith.mulf %59, %59 : vector<8x128xf32>
    %cst_23 = arith.constant dense<0.000000e+00> : vector<128xf32>
    %63 = vector.multi_reduction <add>, %62, %cst_23 [0] : vector<8x128xf32> to vector<128xf32>
    %64 = vector.shape_cast %63 : vector<128xf32> to vector<1x128xf32>
    %cst_24 = arith.constant 1.250000e-01 : f32
    %65 = vector.broadcast %cst_24 : f32 to vector<1x128xf32>
    %66 = arith.mulf %61, %65 : vector<1x128xf32>
    %cst_25 = arith.constant 1.250000e-01 : f32
    %67 = vector.broadcast %cst_25 : f32 to vector<1x128xf32>
    %68 = arith.mulf %64, %67 : vector<1x128xf32>
    %69 = arith.mulf %66, %66 : vector<1x128xf32>
    %70 = arith.subf %68, %69 : vector<1x128xf32>
    %cst_26 = arith.constant 0.000000e+00 : f32
    %71 = vector.broadcast %cst_26 : f32 to vector<1x128xf32>
    %72 = arith.maximumf %70, %71 : vector<1x128xf32>
    %cst_27 = arith.constant 9.99999974E-6 : f32
    %73 = vector.broadcast %cst_27 : f32 to vector<1x128xf32>
    %74 = arith.addf %72, %73 : vector<1x128xf32>
    %75 = math.rsqrt %74 : vector<1x128xf32>
    %76 = arith.mulf %54, %75 : vector<1x128xf32>
    %77 = arith.mulf %66, %76 : vector<1x128xf32>
    %78 = arith.subf %55, %77 : vector<1x128xf32>
    %79 = vector.broadcast %76 : vector<1x128xf32> to vector<8x128xf32>
    %80 = arith.mulf %59, %79 : vector<8x128xf32>
    %81 = vector.broadcast %78 : vector<1x128xf32> to vector<8x128xf32>
    %82 = arith.addf %80, %81 : vector<8x128xf32>
    %c0_28 = arith.constant 0 : index
    %c0_29 = arith.constant 0 : index
    %83 = vector.load %arg5[%c0_28, %c0_29] : memref<128x128xf32, #tpu.memory_space<vmem>>, vector<128x128xf32>
    %cst_30 = arith.constant dense<0.000000e+00> : vector<8x128xf32>
    %84 = tpu.matmul %82, %83, %cst_30 {dimension_numbers = #tpu.dot_dimension_numbers<[1], [0], [0], [1], [0, 0, 1, 1], [], []>} : vector<8x128xf32>, vector<128x128xf32>, vector<8x128xf32> -> vector<8x128xf32>
    %85 = vector.extract_strided_slice %0 {offsets = [5, 0], sizes = [1, 128], strides = [1, 1]} : vector<10x128xf32> to vector<1x128xf32>
    %86 = vector.extract_strided_slice %0 {offsets = [6, 0], sizes = [1, 128], strides = [1, 1]} : vector<10x128xf32> to vector<1x128xf32>
    %87 = vector.extract_strided_slice %0 {offsets = [7, 0], sizes = [1, 128], strides = [1, 1]} : vector<10x128xf32> to vector<1x128xf32>
    %88 = vector.broadcast %85 : vector<1x128xf32> to vector<8x128xf32>
    %89 = arith.addf %84, %88 : vector<8x128xf32>
    %cst_31 = arith.constant 0.000000e+00 : f32
    %90 = vector.broadcast %cst_31 : f32 to vector<8x128xf32>
    %91 = arith.maximumf %89, %90 : vector<8x128xf32>
    %cst_32 = arith.constant dense<0.000000e+00> : vector<128xf32>
    %92 = vector.multi_reduction <add>, %91, %cst_32 [0] : vector<8x128xf32> to vector<128xf32>
    %93 = vector.shape_cast %92 : vector<128xf32> to vector<1x128xf32>
    %94 = arith.mulf %91, %91 : vector<8x128xf32>
    %cst_33 = arith.constant dense<0.000000e+00> : vector<128xf32>
    %95 = vector.multi_reduction <add>, %94, %cst_33 [0] : vector<8x128xf32> to vector<128xf32>
    %96 = vector.shape_cast %95 : vector<128xf32> to vector<1x128xf32>
    %cst_34 = arith.constant 1.250000e-01 : f32
    %97 = vector.broadcast %cst_34 : f32 to vector<1x128xf32>
    %98 = arith.mulf %93, %97 : vector<1x128xf32>
    %cst_35 = arith.constant 1.250000e-01 : f32
    %99 = vector.broadcast %cst_35 : f32 to vector<1x128xf32>
    %100 = arith.mulf %96, %99 : vector<1x128xf32>
    %101 = arith.mulf %98, %98 : vector<1x128xf32>
    %102 = arith.subf %100, %101 : vector<1x128xf32>
    %cst_36 = arith.constant 0.000000e+00 : f32
    %103 = vector.broadcast %cst_36 : f32 to vector<1x128xf32>
    %104 = arith.maximumf %102, %103 : vector<1x128xf32>
    %cst_37 = arith.constant 9.99999974E-6 : f32
    %105 = vector.broadcast %cst_37 : f32 to vector<1x128xf32>
    %106 = arith.addf %104, %105 : vector<1x128xf32>
    %107 = math.rsqrt %106 : vector<1x128xf32>
    %108 = arith.mulf %86, %107 : vector<1x128xf32>
    %109 = arith.mulf %98, %108 : vector<1x128xf32>
    %110 = arith.subf %87, %109 : vector<1x128xf32>
    %111 = vector.broadcast %108 : vector<1x128xf32> to vector<8x128xf32>
    %112 = arith.mulf %91, %111 : vector<8x128xf32>
    %113 = vector.broadcast %110 : vector<1x128xf32> to vector<8x128xf32>
    %114 = arith.addf %112, %113 : vector<8x128xf32>
    %115 = vector.extract_strided_slice %0 {offsets = [8, 0], sizes = [1, 128], strides = [1, 1]} : vector<10x128xf32> to vector<1x128xf32>
    %116 = vector.extract_strided_slice %0 {offsets = [9, 0], sizes = [1, 1], strides = [1, 1]} : vector<10x128xf32> to vector<1x1xf32>
    %117 = vector.broadcast %115 : vector<1x128xf32> to vector<8x128xf32>
    %118 = arith.mulf %114, %117 : vector<8x128xf32>
    %cst_38 = arith.constant dense<0.000000e+00> : vector<8xf32>
    %119 = vector.multi_reduction <add>, %118, %cst_38 [1] : vector<8x128xf32> to vector<8xf32>
    %120 = vector.shape_cast %119 : vector<8xf32> to vector<8x1xf32>
    %121 = vector.broadcast %116 : vector<1x1xf32> to vector<8x1xf32>
    %122 = arith.addf %120, %121 : vector<8x1xf32>
    %c0_39 = arith.constant 0 : index
    %c0_40 = arith.constant 0 : index
    %123 = vector.load %arg6[%c0_39, %c0_40] : memref<8x1xf32, #tpu.memory_space<vmem>>, vector<8x1xf32>
    tpu.vector_store %arg6[%c0_39, %c0_40], %122 {strides = array<i32>} : memref<8x1xf32, #tpu.memory_space<vmem>>, vector<8x1xf32>,
    return
  }
}

</mosaic_0001>

<llo_original>
// kernel: tpu_custom_call.1
$region0: #{tpu_custom_call.1}
  #allocation0 [shape = 'u32[]', space=smem, size = 0x4, offset = 0x4, fixed_abs, tag = 'smem constant byte address 0x4 - core index']
  #allocation1 [shape = 'u32[144,128]{1,0:T(1,128)}', space=vmem, size = 0x12000, scoped, tag = 'internal scratch']
  %s0 = inlined_call_operand.vmem [shape: s32[8,2], index: 0, kind: input, shape index: {}]
  %s1 = inlined_call_operand.vmem [shape: f32[8,5], index: 1, kind: input, shape index: {}]
  %s2 = inlined_call_operand.hbm [shape: f32[10,128], index: 2, kind: input, shape index: {}]
  %s3 = inlined_call_operand.hbm [shape: f32[128,128], index: 3, kind: input, shape index: {}]
  %s4 = inlined_call_operand.vmem [shape: f32[5,128], index: 4, kind: input, shape index: {}]
  %s5 = inlined_call_operand.hbm [shape: f32[128,128], index: 5, kind: input, shape index: {}]
  %s6 = inlined_call_operand.vmem [shape: f32[8,1], index: 6, kind: output, shape index: {}]
  %s7 = sld [smem:[#allocation0]]
  $region46: #{tpu_custom_call.1} parent=0
    _
  %s9 = ssub.s32 1, %s7
  %s10 = scalar_select 0, %s9, %s7
  $region1: #{tpu_custom_call.1} parent=0
    #allocation2 [shape = 'u8[8192]{0}', space=vmem, size = 0x2000, scoped, tag = 'input window, operand 2, single buffered']
    #allocation3 [shape = 's32[1]{0}', space=sflag, size = 0x4, scoped, tag = 'scoped memory for tpu_custom_call.1']
    #allocation4 [shape = 'u8[65536]{0}', space=vmem, size = 0x10000, scoped, tag = 'input window, operand 3, single buffered']
    #allocation5 [shape = 's32[1]{0}', space=sflag, size = 0x4, scoped, tag = 'scoped memory for tpu_custom_call.1']
    #allocation6 [shape = 'u8[65536]{0}', space=vmem, size = 0x10000, scoped, tag = 'input window, operand 5, single buffered']
    %11 = vsyncpa [#allocation3], 0
    %12 = vsyncpa [#allocation5], 0
    // Predicated region
    $region2: #{tpu_custom_call.1} parent=1 // pred_check
      _
    $region3: #{tpu_custom_call.1} parent=1 // pred_check_branch
      %14 = sbr.rel (0) target = $region5
    $region4: #{tpu_custom_call.1} parent=1 // pred_region
      _
    $region5: #{tpu_custom_call.1} parent=1 // pred_fallthru
      _
    // Predicated region
    $region6: #{tpu_custom_call.1} parent=1 // pred_check
      _
    $region7: #{tpu_custom_call.1} parent=1 // pred_check_branch
      %16 = sbr.rel (0) target = $region9
    $region8: #{tpu_custom_call.1} parent=1 // pred_region
      _
    $region9: #{tpu_custom_call.1} parent=1 // pred_fallthru
      _
    // Predicated region
    $region10: #{tpu_custom_call.1} parent=1 // pred_check
      _
    $region11: #{tpu_custom_call.1} parent=1 // pred_check_branch
      %18 = sbr.rel (0) target = $region13
    $region12: #{tpu_custom_call.1} parent=1 // pred_region
      %s20 = ssub.s32 256, 256
      %21 = vsyncadd [#allocation3], %s20
      %s22 = sshll.u32 [#allocation2], 4
      %s23 = int_to_ptr.vmem [resolvable:$true] %s22
      %28 = dma.hbm_to_vmem [thread:$0]  %s2, 256, %s23, [#allocation3], 128, 128, 8
    $region13: #{tpu_custom_call.1} parent=1 // pred_fallthru
      _
    // Predicated region
    $region14: #{tpu_custom_call.1} parent=1 // pred_check
      _
    $region15: #{tpu_custom_call.1} parent=1 // pred_check_branch
      %30 = sbr.rel (0) target = $region17
    $region16: #{tpu_custom_call.1} parent=1 // pred_region
      %s32 = ssub.s32 2048, 2048
      %33 = vsyncadd [#allocation5], %s32
      %s34 = sshll.u32 [#allocation4], 4
      %s35 = int_to_ptr.vmem [resolvable:$true] %s34
      %40 = dma.hbm_to_vmem [thread:$0]  %s3, 2048, %s35, [#allocation5], 128, 128, 8
    $region17: #{tpu_custom_call.1} parent=1 // pred_fallthru
      _
    // Predicated region
    $region18: #{tpu_custom_call.1} parent=1 // pred_check
      _
    $region19: #{tpu_custom_call.1} parent=1 // pred_check_branch
      %42 = sbr.rel (0) target = $region21
    $region20: #{tpu_custom_call.1} parent=1 // pred_region
      _
    $region21: #{tpu_custom_call.1} parent=1 // pred_fallthru
      _
    // Predicated region
    $region22: #{tpu_custom_call.1} parent=1 // pred_check
      _
    $region23: #{tpu_custom_call.1} parent=1 // pred_check_branch
      %44 = sbr.rel (0) target = $region25
    $region24: #{tpu_custom_call.1} parent=1 // pred_region
      %s46 = ssub.s32 2048, 2048
      %47 = vsyncadd [#allocation5], %s46
      %s48 = sshll.u32 [#allocation6], 4
      %s49 = int_to_ptr.vmem [resolvable:$true] %s48
      %54 = dma.hbm_to_vmem [thread:$0]  %s5, 2048, %s49, [#allocation5], 128, 128, 8
    $region25: #{tpu_custom_call.1} parent=1 // pred_fallthru
      _
    // Predicated region
    $region26: #{tpu_custom_call.1} parent=1 // pred_check
      _
    $region27: #{tpu_custom_call.1} parent=1 // pred_check_branch
      %56 = sbr.rel (0) target = $region29
    $region28: #{tpu_custom_call.1} parent=1 // pred_region
      %57 = dma.done [#allocation3], 256
    $region29: #{tpu_custom_call.1} parent=1 // pred_fallthru
      _
    // Predicated region
    $region30: #{tpu_custom_call.1} parent=1 // pred_check
      _
    $region31: #{tpu_custom_call.1} parent=1 // pred_check_branch
      %59 = sbr.rel (0) target = $region33
    $region32: #{tpu_custom_call.1} parent=1 // pred_region
      %60 = dma.done [#allocation5], 2048
    $region33: #{tpu_custom_call.1} parent=1 // pred_fallthru
      _
    // Predicated region
    $region34: #{tpu_custom_call.1} parent=1 // pred_check
      _
    $region35: #{tpu_custom_call.1} parent=1 // pred_check_branch
      %62 = sbr.rel (0) target = $region37
    $region36: #{tpu_custom_call.1} parent=1 // pred_region
      %63 = dma.done [#allocation5], 2048
    $region37: #{tpu_custom_call.1} parent=1 // pred_fallthru
      _
    %v64 = vld [vmem:[#allocation2] sm:$0xff]
    %v65 = vld [vmem:[#allocation2 + $0x8] sm:$0x3]
    %v66 = vld [vmem:[%s1] sm:$0xff]
    %vm67 = vcmask 39936
    %v68 = vsel %vm67, %v66, 0.0
    %v69 = vrot.slane %v68, 4
    %v70 = vadd.f32 %v68, %v69
    %v71 = vrot.slane %v70, 2
    %v72 = vadd.f32 %v70, %v71
    %v73 = vrot.slane %v72, 1
    %v74 = vadd.f32 %v72, %v73
    %v75 = vmul.f32 %v66, %v66
    %v76 = vsel %vm67, %v75, 0.0
    %v77 = vrot.slane %v76, 4
    %v78 = vadd.f32 %v76, %v77
    %v79 = vrot.slane %v78, 2
    %v80 = vadd.f32 %v78, %v79
    %v81 = vrot.slane %v80, 1
    %v82 = vadd.f32 %v80, %v81
    %v83 = vmul.f32 %v74, 0.125
    %v84 = vmul.f32 %v82, 0.125
    %v85 = vmul.f32 %v83, %v83
    %v86 = vsub.f32 %v84, %v85
    %v87 = vmax.f32 %v86, 0.0
    %v88 = vadd.f32 %v87, 1e-05
    %v89 = vrsqrt.pop %v88
    %v90 = vmul.f32 %v64, %v89
    %v91 = vmul.f32 %v83, %v90
    %v93 = vrot.slane %v91, 7
    %v95 = vsub.f32 %v64, %v93
    %v96 = vlaneseq
    %v97 = vshrl.u32 %v96, 7
    %v98 = vsub.s32 0, %v97
    %v99 = vrot.slane %v90, %v98
    %v100 = vmul.f32 %v66, %v99
    %v101 = vlaneseq
    %v102 = vshrl.u32 %v101, 7
    %v103 = vsub.s32 1, %v102
    %v104 = vrot.slane %v95, %v103
    %v105 = vadd.f32 %v100, %v104
    %v106 = vld [vmem:[#allocation4] sm:$0xff]
    %v107 = vld [vmem:[#allocation4 + $0x8] sm:$0xff]
    %v108 = vld [vmem:[#allocation4 + $0x10] sm:$0xff]
    %v109 = vld [vmem:[#allocation4 + $0x18] sm:$0xff]
    %v110 = vld [vmem:[#allocation4 + $0x20] sm:$0xff]
    %v111 = vld [vmem:[#allocation4 + $0x28] sm:$0xff]
    %v112 = vld [vmem:[#allocation4 + $0x30] sm:$0xff]
    %v113 = vld [vmem:[#allocation4 + $0x38] sm:$0xff]
    %v114 = vld [vmem:[#allocation4 + $0x40] sm:$0xff]
    %v115 = vld [vmem:[#allocation4 + $0x48] sm:$0xff]
    %v116 = vld [vmem:[#allocation4 + $0x50] sm:$0xff]
    %v117 = vld [vmem:[#allocation4 + $0x58] sm:$0xff]
    %v118 = vld [vmem:[#allocation4 + $0x60] sm:$0xff]
    %v119 = vld [vmem:[#allocation4 + $0x68] sm:$0xff]
    %v120 = vld [vmem:[#allocation4 + $0x70] sm:$0xff]
    %v121 = vld [vmem:[#allocation4 + $0x78] sm:$0xff]
    %v122 = vld [vmem:[%s4] sm:$0x1f]
    %v123 = vlaneseq
    %v124 = vand.u32 %v123, 127
    %v125 = vld [vmem:[%s0] sm:$0xff]
    %126 = vset.pattern.permute.xlu0 0
    %127 = vperm.xlu0 %126, %v125
    %v128 = vpop.permute.xlu0 %127
    %vm129 = vcmp.eq.s32.totalorder %v124, %v128
    %v130 = vsel %vm129, 1.0, 0.0
    %v131 = vadd.f32 %v130, 0.0
    %v132 = vadd.s32 %v125, 10
    %133 = vset.pattern.permute.xlu0 1
    %134 = vperm.xlu0 %133, %v132
    %v135 = vpop.permute.xlu0 %134
    %vm136 = vcmp.eq.s32.totalorder %v124, %v135
    %v137 = vsel %vm136, 1.0, 0.0
    %v138 = vadd.f32 %v131, %v137
    %v140 = vsel %vm67, %v105, 0
    %vm142 = vcmask 1044480
    %v144 = vsel %vm142, %v122, 0
    %146 = vmatprep.subr.mxu0 0.0
    %147 = vmatpush1.msra.mxu0 0.0
    %148 = vmatprep.subr.mxu0 0.0
    %149 = vmatpush1.msra.mxu0 0.0
    %150 = vmatprep.subr.mxu0 0.0
    %151 = vmatpush1.msra.mxu0 0.0
    %152 = vmatprep.subr.mxu0 0.0
    %153 = vmatpush1.msra.mxu0 0.0
    %154 = vmatprep.subr.mxu0 0.0
    %155 = vmatpush1.msra.mxu0 0.0
    %156 = vmatprep.subr.mxu0 0.0
    %157 = vmatpush1.msra.mxu0 0.0
    %158 = vmatprep.subr.mxu0 0.0
    %159 = vmatpush1.msra.mxu0 0.0
    %160 = vmatprep.subr.mxu0 0.0
    %161 = vmatpush1.msra.mxu0 0.0
    %162 = vmatprep.subr.mxu0 0.0
    %163 = vmatpush1.msra.mxu0 0.0
    %164 = vmatprep.subr.mxu0 0.0
    %165 = vmatpush1.msra.mxu0 0.0
    %166 = vmatprep.subr.mxu0 0.0
    %167 = vmatpush1.msra.mxu0 0.0
    %168 = vmatprep.subr.mxu0 0.0
    %169 = vmatpush1.msra.mxu0 0.0
    %170 = vmatprep.subr.mxu0 0.0
    %171 = vmatpush1.msra.mxu0 0.0
    %172 = vmatprep.subr.mxu0 0.0
    %173 = vmatpush1.msra.mxu0 0.0
    %174 = vmatprep.subr.mxu0 0.0
    %175 = vmatpush1.msra.mxu0 0.0
    %176 = vmatprep.subr.mxu0 0.0
    %177 = vmatpush1.msra.mxu0 %v144
    %178 = vmatprep.subr.mxu0 0.0
    %179 = vmatpush2.msra.mxu0 0.0
    %180 = vmatprep.subr.mxu0 0.0
    %181 = vmatpush2.msra.mxu0 0.0
    %182 = vmatprep.subr.mxu0 0.0
    %183 = vmatpush2.msra.mxu0 0.0
    %184 = vmatprep.subr.mxu0 0.0
    %185 = vmatpush2.msra.mxu0 0.0
    %186 = vmatprep.subr.mxu0 0.0
    %187 = vmatpush2.msra.mxu0 0.0
    %188 = vmatprep.subr.mxu0 0.0
    %189 = vmatpush2.msra.mxu0 0.0
    %190 = vmatprep.subr.mxu0 0.0
    %191 = vmatpush2.msra.mxu0 0.0
    %192 = vmatprep.subr.mxu0 0.0
    %193 = vmatpush2.msra.mxu0 0.0
    %194 = vmatprep.subr.mxu0 0.0
    %195 = vmatpush2.msra.mxu0 0.0
    %196 = vmatprep.subr.mxu0 0.0
    %197 = vmatpush2.msra.mxu0 0.0
    %198 = vmatprep.subr.mxu0 0.0
    %199 = vmatpush2.msra.mxu0 0.0
    %200 = vmatprep.subr.mxu0 0.0
    %201 = vmatpush2.msra.mxu0 0.0
    %202 = vmatprep.subr.mxu0 0.0
    %203 = vmatpush2.msra.mxu0 0.0
    %204 = vmatprep.subr.mxu0 0.0
    %205 = vmatpush2.msra.mxu0 0.0
    %206 = vmatprep.subr.mxu0 0.0
    %207 = vmatpush2.msra.mxu0 0.0
    %208 = vmatprep.subr.mxu0 0.0
    %209 = vmatpush2.msra.mxu0 0.0
    %210 = vmatprep.mubr.f32.mxu0 0.0
    %211 = vmatmul.mubr.f32.gmra.mxu0 %v140
    %v212 = vpop.f32.mrf.mxu0
    %v213 = vadd.f32 0.0, %v212
    %v214 = vpop.f32.mrf.mxu0
    %215 = vdwg.mxu0
    %216 = vmatprep.subr.mxu0 0.0
    %217 = vmatpush1.msra.mxu0 %v121
    %218 = vmatprep.subr.mxu0 0.0
    %219 = vmatpush1.msra.mxu0 %v120
    %220 = vmatprep.subr.mxu0 0.0
    %221 = vmatpush1.msra.mxu0 %v119
    %222 = vmatprep.subr.mxu0 0.0
    %223 = vmatpush1.msra.mxu0 %v118
    %224 = vmatprep.subr.mxu0 0.0
    %225 = vmatpush1.msra.mxu0 %v117
    %226 = vmatprep.subr.mxu0 0.0
    %227 = vmatpush1.msra.mxu0 %v116
    %228 = vmatprep.subr.mxu0 0.0
    %229 = vmatpush1.msra.mxu0 %v115
    %230 = vmatprep.subr.mxu0 0.0
    %231 = vmatpush1.msra.mxu0 %v114
    %232 = vmatprep.subr.mxu0 0.0
    %233 = vmatpush1.msra.mxu0 %v113
    %234 = vmatprep.subr.mxu0 0.0
    %235 = vmatpush1.msra.mxu0 %v112
    %236 = vmatprep.subr.mxu0 0.0
    %237 = vmatpush1.msra.mxu0 %v111
    %238 = vmatprep.subr.mxu0 0.0
    %239 = vmatpush1.msra.mxu0 %v110
    %240 = vmatprep.subr.mxu0 0.0
    %241 = vmatpush1.msra.mxu0 %v109
    %242 = vmatprep.subr.mxu0 0.0
    %243 = vmatpush1.msra.mxu0 %v108
    %244 = vmatprep.subr.mxu0 0.0
    %245 = vmatpush1.msra.mxu0 %v107
    %246 = vmatprep.subr.mxu0 0.0
    %247 = vmatpush1.msra.mxu0 %v106
    %248 = vmatprep.subr.mxu0 0.0
    %249 = vmatpush2.msra.mxu0 0.0
    %250 = vmatprep.subr.mxu0 0.0
    %251 = vmatpush2.msra.mxu0 0.0
    %252 = vmatprep.subr.mxu0 0.0
    %253 = vmatpush2.msra.mxu0 0.0
    %254 = vmatprep.subr.mxu0 0.0
    %255 = vmatpush2.msra.mxu0 0.0
    %256 = vmatprep.subr.mxu0 0.0
    %257 = vmatpush2.msra.mxu0 0.0
    %258 = vmatprep.subr.mxu0 0.0
    %259 = vmatpush2.msra.mxu0 0.0
    %260 = vmatprep.subr.mxu0 0.0
    %261 = vmatpush2.msra.mxu0 0.0
    %262 = vmatprep.subr.mxu0 0.0
    %263 = vmatpush2.msra.mxu0 0.0
    %264 = vmatprep.subr.mxu0 0.0
    %265 = vmatpush2.msra.mxu0 0.0
    %266 = vmatprep.subr.mxu0 0.0
    %267 = vmatpush2.msra.mxu0 0.0
    %268 = vmatprep.subr.mxu0 0.0
    %269 = vmatpush2.msra.mxu0 0.0
    %270 = vmatprep.subr.mxu0 0.0
    %271 = vmatpush2.msra.mxu0 0.0
    %272 = vmatprep.subr.mxu0 0.0
    %273 = vmatpush2.msra.mxu0 0.0
    %274 = vmatprep.subr.mxu0 0.0
    %275 = vmatpush2.msra.mxu0 0.0
    %276 = vmatprep.subr.mxu0 0.0
    %277 = vmatpush2.msra.mxu0 0.0
    %278 = vmatprep.subr.mxu0 0.0
    %279 = vmatpush2.msra.mxu0 0.0
    %280 = vmatprep.mubr.f32.mxu0 0.0
    %281 = vmatmul.mubr.f32.gmra.mxu0 %v138
    %v282 = vpop.f32.mrf.mxu0
    %v283 = vadd.f32 %v213, %v282
    %v284 = vpop.f32.mrf.mxu0
    %285 = vdwg.mxu0
    %v286 = vlaneseq
    %v287 = vshrl.u32 %v286, 7
    %v288 = vsub.s32 2, %v287
    %v289 = vrot.slane %v64, %v288
    %v290 = vadd.f32 %v283, %v289
    %v291 = vmax.f32 %v290, 0.0
    %v292 = vrot.slane %v291, 4
    %v293 = vadd.f32 %v291, %v292
    %v294 = vrot.slane %v293, 2
    %v295 = vadd.f32 %v293, %v294
    %v296 = vrot.slane %v295, 1
    %v297 = vadd.f32 %v295, %v296
    %v298 = vmul.f32 %v291, %v291
    %v299 = vrot.slane %v298, 4
    %v300 = vadd.f32 %v298, %v299
    %v301 = vrot.slane %v300, 2
    %v302 = vadd.f32 %v300, %v301
    %v303 = vrot.slane %v302, 1
    %v304 = vadd.f32 %v302, %v303
    %v305 = vmul.f32 %v297, 0.125
    %v306 = vmul.f32 %v304, 0.125
    %v307 = vmul.f32 %v305, %v305
    %v308 = vsub.f32 %v306, %v307
    %v309 = vmax.f32 %v308, 0.0
    %v310 = vadd.f32 %v309, 1e-05
    %v311 = vrsqrt.pop %v310
    %v312 = vmul.f32 %v64, %v311
    %v313 = vmul.f32 %v305, %v312
    %v315 = vrot.slane %v313, 7
    %v317 = vsub.f32 %v64, %v315
    %v318 = vlaneseq
    %v319 = vshrl.u32 %v318, 7
    %v320 = vsub.s32 3, %v319
    %v321 = vrot.slane %v312, %v320
    %v322 = vmul.f32 %v291, %v321
    %v323 = vlaneseq
    %v324 = vshrl.u32 %v323, 7
    %v325 = vsub.s32 4, %v324
    %v326 = vrot.slane %v317, %v325
    %v327 = vadd.f32 %v322, %v326
    %v328 = vld [vmem:[#allocation6] sm:$0xff]
    %v329 = vld [vmem:[#allocation6 + $0x8] sm:$0xff]
    %v330 = vld [vmem:[#allocation6 + $0x10] sm:$0xff]
    %v331 = vld [vmem:[#allocation6 + $0x18] sm:$0xff]
    %v332 = vld [vmem:[#allocation6 + $0x20] sm:$0xff]
    %v333 = vld [vmem:[#allocation6 + $0x28] sm:$0xff]
    %v334 = vld [vmem:[#allocation6 + $0x30] sm:$0xff]
    %v335 = vld [vmem:[#allocation6 + $0x38] sm:$0xff]
    %v336 = vld [vmem:[#allocation6 + $0x40] sm:$0xff]
    %v337 = vld [vmem:[#allocation6 + $0x48] sm:$0xff]
    %v338 = vld [vmem:[#allocation6 + $0x50] sm:$0xff]
    %v339 = vld [vmem:[#allocation6 + $0x58] sm:$0xff]
    %v340 = vld [vmem:[#allocation6 + $0x60] sm:$0xff]
    %v341 = vld [vmem:[#allocation6 + $0x68] sm:$0xff]
    %v342 = vld [vmem:[#allocation6 + $0x70] sm:$0xff]
    %v343 = vld [vmem:[#allocation6 + $0x78] sm:$0xff]
    %v344 = vlaneseq
    %v345 = vshrl.u32 %v344, 7
    %v346 = vsub.s32 5, %v345
    %v347 = vrot.slane %v64, %v346
    %348 = vmatprep.subr.mxu0 0.0
    %349 = vmatpush1.msra.mxu0 %v343
    %350 = vmatprep.subr.mxu0 0.0
    %351 = vmatpush1.msra.mxu0 %v342
    %352 = vmatprep.subr.mxu0 0.0
    %353 = vmatpush1.msra.mxu0 %v341
    %354 = vmatprep.subr.mxu0 0.0
    %355 = vmatpush1.msra.mxu0 %v340
    %356 = vmatprep.subr.mxu0 0.0
    %357 = vmatpush1.msra.mxu0 %v339
    %358 = vmatprep.subr.mxu0 0.0
    %359 = vmatpush1.msra.mxu0 %v338
    %360 = vmatprep.subr.mxu0 0.0
    %361 = vmatpush1.msra.mxu0 %v337
    %362 = vmatprep.subr.mxu0 0.0
    %363 = vmatpush1.msra.mxu0 %v336
    %364 = vmatprep.subr.mxu0 0.0
    %365 = vmatpush1.msra.mxu0 %v335
    %366 = vmatprep.subr.mxu0 0.0
    %367 = vmatpush1.msra.mxu0 %v334
    %368 = vmatprep.subr.mxu0 0.0
    %369 = vmatpush1.msra.mxu0 %v333
    %370 = vmatprep.subr.mxu0 0.0
    %371 = vmatpush1.msra.mxu0 %v332
    %372 = vmatprep.subr.mxu0 0.0
    %373 = vmatpush1.msra.mxu0 %v331
    %374 = vmatprep.subr.mxu0 0.0
    %375 = vmatpush1.msra.mxu0 %v330
    %376 = vmatprep.subr.mxu0 0.0
    %377 = vmatpush1.msra.mxu0 %v329
    %378 = vmatprep.subr.mxu0 0.0
    %379 = vmatpush1.msra.mxu0 %v328
    %380 = vmatprep.subr.mxu0 0.0
    %381 = vmatpush2.msra.mxu0 0.0
    %382 = vmatprep.subr.mxu0 0.0
    %383 = vmatpush2.msra.mxu0 0.0
    %384 = vmatprep.subr.mxu0 0.0
    %385 = vmatpush2.msra.mxu0 0.0
    %386 = vmatprep.subr.mxu0 0.0
    %387 = vmatpush2.msra.mxu0 0.0
    %388 = vmatprep.subr.mxu0 0.0
    %389 = vmatpush2.msra.mxu0 0.0
    %390 = vmatprep.subr.mxu0 0.0
    %391 = vmatpush2.msra.mxu0 0.0
    %392 = vmatprep.subr.mxu0 0.0
    %393 = vmatpush2.msra.mxu0 0.0
    %394 = vmatprep.subr.mxu0 0.0
    %395 = vmatpush2.msra.mxu0 0.0
    %396 = vmatprep.subr.mxu0 0.0
    %397 = vmatpush2.msra.mxu0 0.0
    %398 = vmatprep.subr.mxu0 0.0
    %399 = vmatpush2.msra.mxu0 0.0
    %400 = vmatprep.subr.mxu0 0.0
    %401 = vmatpush2.msra.mxu0 0.0
    %402 = vmatprep.subr.mxu0 0.0
    %403 = vmatpush2.msra.mxu0 0.0
    %404 = vmatprep.subr.mxu0 0.0
    %405 = vmatpush2.msra.mxu0 0.0
    %406 = vmatprep.subr.mxu0 0.0
    %407 = vmatpush2.msra.mxu0 0.0
    %408 = vmatprep.subr.mxu0 0.0
    %409 = vmatpush2.msra.mxu0 0.0
    %410 = vmatprep.subr.mxu0 0.0
    %411 = vmatpush2.msra.mxu0 0.0
    %412 = vmatprep.mubr.f32.mxu0 0.0
    %413 = vmatmul.mubr.f32.gmra.mxu0 %v327
    %v414 = vpop.f32.mrf.mxu0
    %v415 = vadd.f32 %v347, %v414
    %v416 = vpop.f32.mrf.mxu0
    %417 = vdwg.mxu0
    %v418 = vmax.f32 %v415, 0.0
    %v419 = vrot.slane %v418, 4
    %v420 = vadd.f32 %v418, %v419
    %v421 = vrot.slane %v420, 2
    %v422 = vadd.f32 %v420, %v421
    %v423 = vrot.slane %v422, 1
    %v424 = vadd.f32 %v422, %v423
    %v425 = vmul.f32 %v418, %v418
    %v426 = vrot.slane %v425, 4
    %v427 = vadd.f32 %v425, %v426
    %v428 = vrot.slane %v427, 2
    %v429 = vadd.f32 %v427, %v428
    %v430 = vrot.slane %v429, 1
    %v431 = vadd.f32 %v429, %v430
    %v432 = vmul.f32 %v424, 0.125
    %v433 = vmul.f32 %v431, 0.125
    %v434 = vmul.f32 %v432, %v432
    %v435 = vsub.f32 %v433, %v434
    %v436 = vmax.f32 %v435, 0.0
    %v437 = vadd.f32 %v436, 1e-05
    %v438 = vrsqrt.pop %v437
    %v439 = vmul.f32 %v64, %v438
    %v440 = vmul.f32 %v432, %v439
    %v442 = vrot.slane %v440, 7
    %v444 = vsub.f32 %v64, %v442
    %v445 = vlaneseq
    %v446 = vshrl.u32 %v445, 7
    %v447 = vsub.s32 6, %v446
    %v448 = vrot.slane %v439, %v447
    %v449 = vmul.f32 %v418, %v448
    %v450 = vlaneseq
    %v451 = vshrl.u32 %v450, 7
    %v452 = vsub.s32 7, %v451
    %v453 = vrot.slane %v444, %v452
    %v454 = vadd.f32 %v449, %v453
    %v455 = vlaneseq
    %v456 = vshrl.u32 %v455, 7
    %v457 = vsub.s32 0, %v456
    %v458 = vrot.slane %v65, %v457
    %v459 = vmul.f32 %v454, %v458
    %460 = vadd.xlane.f32.xlu0 %v459
    %v461 = vpop.xlane.xlu0 %460
    %v462 = vlaneseq
    %v463 = vshrl.u32 %v462, 7
    %v464 = vsub.s32 1, %v463
    %v465 = vrot.slane %v65, %v464
    %v466 = vadd.f32 %v461, %v465
    %vm467 = vcmask 7168
    %468 = vst.msk [vmem:[%s6] sm:$0xff] %vm467, %v466
    // Predicated region
    $region38: #{tpu_custom_call.1} parent=1 // pred_check
      _
    $region39: #{tpu_custom_call.1} parent=1 // pred_check_branch
      %470 = sbr.rel (0) target = $region41
    $region40: #{tpu_custom_call.1} parent=1 // pred_region
      _
    $region41: #{tpu_custom_call.1} parent=1 // pred_fallthru
      _
    // Predicated region
    $region42: #{tpu_custom_call.1} parent=1 // pred_check
      _
    $region43: #{tpu_custom_call.1} parent=1 // pred_check_branch
      %472 = sbr.rel (0) target = $region45
    $region44: #{tpu_custom_call.1} parent=1 // pred_region
      _
    $region45: #{tpu_custom_call.1} parent=1 // pred_fallthru
      _
    %473 = vsyncpa [#allocation3], 1
    %474 = vsyncpa [#allocation5], 1

</llo_original>
